<compile_context>
chip_gen: v5e
topology: v5e:2x2
jax: 0.10.0
libtpu: 0.0.40
codegen_flags: <defaults>
</compile_context>

<pallas_src>
import functools

import jax
import jax.numpy as jnp
from jax.experimental import pallas as pl
from jax.experimental.pallas import tpu as pltpu


def _l1_epe_kernel(inv_l1_count, inv_epe_count, rows, r_tile, need_mask,
                   o_ref, t_ref, l1_ref, epe_ref, l1_acc, epe_acc):
    """Accumulate sum(|d|) and sum(||d||_2 over C) across the (B, row-tiles) grid.

    o_ref, t_ref : (C, r_tile, L) tiles of output / target (C = leading axis)
    l1_ref, epe_ref : (1, 1) scalar outputs (resident across the whole grid)
    l1_acc, epe_acc : (r_tile, L) f32 VMEM partial-sum accumulators
    """
    b = pl.program_id(0)
    j = pl.program_id(1)

    @pl.when((b == 0) & (j == 0))
    def _():
        l1_acc[...] = jnp.zeros_like(l1_acc)
        epe_acc[...] = jnp.zeros_like(epe_acc)

    d = t_ref[...].astype(jnp.float32) - o_ref[...].astype(jnp.float32)  # (C, R, L)

    if need_mask:
        # Zero out rows past the true extent of the rows axis (ragged last tile).
        row_ids = jax.lax.broadcasted_iota(jnp.int32, d.shape[1:], 0) + j * r_tile
        valid = row_ids < rows                                           # (R, L)
        d = jnp.where(valid[None, :, :], d, 0.0)

    # Channel axis (axis 0) is a leading, non-layout axis -> pure VPU adds.
    l1_acc[...] += jnp.sum(jnp.abs(d), axis=0)            # (R, L)
    epe_acc[...] += jnp.sqrt(jnp.sum(d * d, axis=0))      # per-pixel L2 over C

    @pl.when((b == pl.num_programs(0) - 1) & (j == pl.num_programs(1) - 1))
    def _():
        # Single full reduction of the vreg-shaped partial sums, done once.
        l1_ref[...] = jnp.sum(l1_acc[...], keepdims=True) * inv_l1_count
        epe_ref[...] = jnp.sum(epe_acc[...], keepdims=True) * inv_epe_count


def l1_loss(output, target):
    """Pallas equivalent of L1Loss.forward: returns [L1 mean, EPE mean].

    output, target: NCHW float tensors of identical shape.
    """
    assert output.shape == target.shape
    B, C, H, W = output.shape
    HW = H * W
    N = B * HW                      # number of "pixels" (EPE divisor)
    itemsize = jnp.dtype(output.dtype).itemsize

    # Free (contiguous) reshape: prefer dense 128-lane rows when possible.
    if HW % 128 == 0:
        L = 128
        rows = HW // 128
    else:
        L = W
        rows = H
    o = output.reshape(B, C, rows, L)
    t = target.reshape(B, C, rows, L)

    # Rows-tile so that each input block is ~2 MiB (fits 2 inputs x 2 buffers
    # under the v5e 16 MiB scoped-VMEM default and v7x's smaller VMEM).
    target_block_bytes = 2 * 1024 * 1024
    bytes_per_row = max(1, C * L * itemsize)
    r_target = max(8, (target_block_bytes // bytes_per_row) // 8 * 8)
    if rows <= r_target:
        r_tile = rows               # equals full dim -> always layout-legal
    else:
        r_tile = r_target           # multiple of 8   -> layout-legal
    n_row_tiles = pl.cdiv(rows, r_tile)
    need_mask = (rows % r_tile) != 0

    kernel = functools.partial(
        _l1_epe_kernel,
        float(1.0 / (C * N)),       # L1 mean divides by all elements
        float(1.0 / N),             # EPE mean divides by B*H*W
        rows, r_tile, need_mask,
    )

    cost = pl.CostEstimate(
        flops=6 * C * N,
        transcendentals=N,
        bytes_accessed=2 * C * N * itemsize + 8,
    )

    l1_out, epe_out = pl.pallas_call(
        kernel,
        out_shape=(jax.ShapeDtypeStruct((1, 1), jnp.float32),
                   jax.ShapeDtypeStruct((1, 1), jnp.float32)),
        grid_spec=pltpu.PrefetchScalarGridSpec(
            num_scalar_prefetch=0,
            grid=(B, n_row_tiles),
            in_specs=[
                pl.BlockSpec((None, C, r_tile, L), lambda b, j: (b, 0, j, 0)),
                pl.BlockSpec((None, C, r_tile, L), lambda b, j: (b, 0, j, 0)),
            ],
            out_specs=[
                pl.BlockSpec((1, 1), lambda b, j: (0, 0)),
                pl.BlockSpec((1, 1), lambda b, j: (0, 0)),
            ],
            scratch_shapes=[
                pltpu.VMEM((r_tile, L), jnp.float32),
                pltpu.VMEM((r_tile, L), jnp.float32),
            ],
        ),
        compiler_params=pltpu.CompilerParams(
            dimension_semantics=("arbitrary", "arbitrary"),
            vmem_limit_bytes=32 * 1024 * 1024,
        ),
        cost_estimate=cost,
    )(o, t)

    return [l1_out[0, 0], epe_out[0, 0]]


if __name__ == "__main__":
    key = jax.random.PRNGKey(0)
    k1, k2 = jax.random.split(key)

    B, C, H, W = 2, 4, 16, 16   # small NCHW flow-like tensors
    output = jax.random.normal(k1, (B, C, H, W), dtype=jnp.float32)
    target = jax.random.normal(k2, (B, C, H, W), dtype=jnp.float32)

    l1_val, epe_val = l1_loss(output, target)
    jax.block_until_ready(l1_val)
    jax.block_until_ready(epe_val)

    # Pure-JAX reference check of the PyTorch semantics.
    ref_l1 = jnp.mean(jnp.abs(output - target))
    ref_epe = jnp.mean(jnp.sqrt(jnp.sum((target - output) ** 2, axis=1)))
    assert jnp.allclose(l1_val, ref_l1, rtol=1e-5, atol=1e-5)
    assert jnp.allclose(epe_val, ref_epe, rtol=1e-5, atol=1e-5)

    print("KERNEL_OK")
</pallas_src>

<mosaic_0001>
module attributes {stable_mosaic.version = 11 : i64} {
  func.func @_l1_epe_kernel(%arg0: i32, %arg1: i32, %arg2: memref<1x4x2x128xf32, #tpu.memory_space<vmem>>, %arg3: memref<1x4x2x128xf32, #tpu.memory_space<vmem>>, %arg4: memref<1x1xf32, #tpu.memory_space<vmem>>, %arg5: memref<1x1xf32, #tpu.memory_space<vmem>>, %arg6: memref<2x128xf32, #tpu.memory_space<vmem>>, %arg7: memref<2x128xf32, #tpu.memory_space<vmem>>) attributes {dimension_semantics = [#tpu.dimension_semantics<arbitrary>, #tpu.dimension_semantics<arbitrary>], iteration_bounds = array<i64: 2, 1>, scalar_prefetch = 0 : i64, scratch_operands = 2 : i64, tpu.core_type = #tpu.core_type<tc>, window_params = [{transform_indices = @transform_0, window_bounds = array<i64: 1, 4, 2, 128>}, {transform_indices = @transform_1, window_bounds = array<i64: 1, 4, 2, 128>}, {pipeline_mode = #tpu.pipeline_mode<synchronous>, transform_indices = @transform_2, window_bounds = array<i64: 1, 1>}, {pipeline_mode = #tpu.pipeline_mode<synchronous>, transform_indices = @transform_3, window_bounds = array<i64: 1, 1>}]} {
    %c0_i32 = arith.constant 0 : i32
    %0 = arith.cmpi eq, %arg0, %c0_i32 : i32
    %c0_i32_0 = arith.constant 0 : i32
    %1 = arith.cmpi eq, %arg1, %c0_i32_0 : i32
    %2 = arith.andi %0, %1 : i1
    %3 = arith.extui %2 : i1 to i32
    %c0_i32_1 = arith.constant 0 : i32
    %4 = arith.cmpi ne, %3, %c0_i32_1 : i32
    scf.if %4 {
      %cst_20 = arith.constant 0.000000e+00 : f32
      %26 = vector.broadcast %cst_20 : f32 to vector<2x128xf32>
      %c0_21 = arith.constant 0 : index
      %c0_22 = arith.constant 0 : index
      %27 = vector.load %arg6[%c0_21, %c0_22] : memref<2x128xf32, #tpu.memory_space<vmem>>, vector<2x128xf32>
      tpu.vector_store %arg6[%c0_21, %c0_22], %26 {strides = array<i32>} : memref<2x128xf32, #tpu.memory_space<vmem>>, vector<2x128xf32>,
      %cst_23 = arith.constant 0.000000e+00 : f32
      %28 = vector.broadcast %cst_23 : f32 to vector<2x128xf32>
      %c0_24 = arith.constant 0 : index
      %c0_25 = arith.constant 0 : index
      %29 = vector.load %arg7[%c0_24, %c0_25] : memref<2x128xf32, #tpu.memory_space<vmem>>, vector<2x128xf32>
      tpu.vector_store %arg7[%c0_24, %c0_25], %28 {strides = array<i32>} : memref<2x128xf32, #tpu.memory_space<vmem>>, vector<2x128xf32>,
    } else {
    }
    %c0 = arith.constant 0 : index
    %c0_2 = arith.constant 0 : index
    %c0_3 = arith.constant 0 : index
    %c0_4 = arith.constant 0 : index
    %5 = vector.load %arg3[%c0, %c0_2, %c0_3, %c0_4] : memref<1x4x2x128xf32, #tpu.memory_space<vmem>>, vector<1x4x2x128xf32>
    %6 = vector.shape_cast %5 : vector<1x4x2x128xf32> to vector<4x2x128xf32>
    %c0_5 = arith.constant 0 : index
    %c0_6 = arith.constant 0 : index
    %c0_7 = arith.constant 0 : index
    %c0_8 = arith.constant 0 : index
    %7 = vector.load %arg2[%c0_5, %c0_6, %c0_7, %c0_8] : memref<1x4x2x128xf32, #tpu.memory_space<vmem>>, vector<1x4x2x128xf32>
    %8 = vector.shape_cast %7 : vector<1x4x2x128xf32> to vector<4x2x128xf32>
    %9 = arith.subf %6, %8 : vector<4x2x128xf32>
    %c0_9 = arith.constant 0 : index
    %c0_10 = arith.constant 0 : index
    %10 = vector.load %arg6[%c0_9, %c0_10] : memref<2x128xf32, #tpu.memory_space<vmem>>, vector<2x128xf32>
    %11 = math.absf %9 : vector<4x2x128xf32>
    %cst = arith.constant dense<0.000000e+00> : vector<2x128xf32>
    %12 = vector.multi_reduction <add>, %11, %cst [0] : vector<4x2x128xf32> to vector<2x128xf32>
    %13 = arith.addf %10, %12 : vector<2x128xf32>
    %c0_11 = arith.constant 0 : index
    %c0_12 = arith.constant 0 : index
    %14 = vector.load %arg6[%c0_11, %c0_12] : memref<2x128xf32, #tpu.memory_space<vmem>>, vector<2x128xf32>
    tpu.vector_store %arg6[%c0_11, %c0_12], %13 {strides = array<i32>} : memref<2x128xf32, #tpu.memory_space<vmem>>, vector<2x128xf32>,
    %c0_13 = arith.constant 0 : index
    %c0_14 = arith.constant 0 : index
    %15 = vector.load %arg7[%c0_13, %c0_14] : memref<2x128xf32, #tpu.memory_space<vmem>>, vector<2x128xf32>
    %16 = arith.mulf %9, %9 : vector<4x2x128xf32>
    %cst_15 = arith.constant dense<0.000000e+00> : vector<2x128xf32>
    %17 = vector.multi_reduction <add>, %16, %cst_15 [0] : vector<4x2x128xf32> to vector<2x128xf32>
    %18 = math.sqrt %17 : vector<2x128xf32>
    %19 = arith.addf %15, %18 : vector<2x128xf32>
    %c0_16 = arith.constant 0 : index
    %c0_17 = arith.constant 0 : index
    %20 = vector.load %arg7[%c0_16, %c0_17] : memref<2x128xf32, #tpu.memory_space<vmem>>, vector<2x128xf32>
    tpu.vector_store %arg7[%c0_16, %c0_17], %19 {strides = array<i32>} : memref<2x128xf32, #tpu.memory_space<vmem>>, vector<2x128xf32>,
    %c1_i32 = arith.constant 1 : i32
    %21 = arith.cmpi eq, %arg0, %c1_i32 : i32
    %c0_i32_18 = arith.constant 0 : i32
    %22 = arith.cmpi eq, %arg1, %c0_i32_18 : i32
    %23 = arith.andi %21, %22 : i1
    %24 = arith.extui %23 : i1 to i32
    %c0_i32_19 = arith.constant 0 : i32
    %25 = arith.cmpi ne, %24, %c0_i32_19 : i32
    scf.if %25 {
      %c0_20 = arith.constant 0 : index
      %c0_21 = arith.constant 0 : index
      %26 = vector.load %arg6[%c0_20, %c0_21] : memref<2x128xf32, #tpu.memory_space<vmem>>, vector<2x128xf32>
      %27 = vector.shape_cast %26 : vector<2x128xf32> to vector<1x2x128xf32>
      %cst_22 = arith.constant dense<0.000000e+00> : vector<1xf32>
      %28 = vector.multi_reduction <add>, %27, %cst_22 [1, 2] : vector<1x2x128xf32> to vector<1xf32>
      %29 = vector.shape_cast %28 : vector<1xf32> to vector<1x1x1xf32>
      %30 = vector.extract %29[0, 0, 0] : f32 from vector<1x1x1xf32>
      %31 = vector.broadcast %30 : f32 to vector<1x1xf32>
      %cst_23 = arith.constant 4.8828125E-4 : f32
      %32 = vector.broadcast %cst_23 : f32 to vector<1x1xf32>
      %33 = arith.mulf %31, %32 : vector<1x1xf32>
      %c0_24 = arith.constant 0 : index
      %c0_25 = arith.constant 0 : index
      %34 = vector.load %arg4[%c0_24, %c0_25] : memref<1x1xf32, #tpu.memory_space<vmem>>, vector<1x1xf32>
      tpu.vector_store %arg4[%c0_24, %c0_25], %33 {strides = array<i32>} : memref<1x1xf32, #tpu.memory_space<vmem>>, vector<1x1xf32>,
      %c0_26 = arith.constant 0 : index
      %c0_27 = arith.constant 0 : index
      %35 = vector.load %arg7[%c0_26, %c0_27] : memref<2x128xf32, #tpu.memory_space<vmem>>, vector<2x128xf32>
      %36 = vector.shape_cast %35 : vector<2x128xf32> to vector<1x2x128xf32>
      %cst_28 = arith.constant dense<0.000000e+00> : vector<1xf32>
      %37 = vector.multi_reduction <add>, %36, %cst_28 [1, 2] : vector<1x2x128xf32> to vector<1xf32>
      %38 = vector.shape_cast %37 : vector<1xf32> to vector<1x1x1xf32>
      %39 = vector.extract %38[0, 0, 0] : f32 from vector<1x1x1xf32>
      %40 = vector.broadcast %39 : f32 to vector<1x1xf32>
      %cst_29 = arith.constant 0.001953125 : f32
      %41 = vector.broadcast %cst_29 : f32 to vector<1x1xf32>
      %42 = arith.mulf %40, %41 : vector<1x1xf32>
      %c0_30 = arith.constant 0 : index
      %c0_31 = arith.constant 0 : index
      %43 = vector.load %arg5[%c0_30, %c0_31] : memref<1x1xf32, #tpu.memory_space<vmem>>, vector<1x1xf32>
      tpu.vector_store %arg5[%c0_30, %c0_31], %42 {strides = array<i32>} : memref<1x1xf32, #tpu.memory_space<vmem>>, vector<1x1xf32>,
    } else {
    }
    return
  }
  func.func @transform_0(%arg0: i32, %arg1: i32) -> (i32, i32, i32, i32) {
    %c0_i32 = arith.constant 0 : i32
    %c0_i32_0 = arith.constant 0 : i32
    %c0_i32_1 = arith.constant 0 : i32
    return %arg0, %c0_i32, %arg1, %c0_i32_0 : i32, i32, i32, i32
  }
  func.func @transform_1(%arg0: i32, %arg1: i32) -> (i32, i32, i32, i32) {
    %c0_i32 = arith.constant 0 : i32
    %c0_i32_0 = arith.constant 0 : i32
    %c0_i32_1 = arith.constant 0 : i32
    return %arg0, %c0_i32, %arg1, %c0_i32_0 : i32, i32, i32, i32
  }
  func.func @transform_2(%arg0: i32, %arg1: i32) -> (i32, i32) {
    %c0_i32 = arith.constant 0 : i32
    %c0_i32_0 = arith.constant 0 : i32
    %c0_i32_1 = arith.constant 0 : i32
    return %c0_i32, %c0_i32_0 : i32, i32
  }
  func.func @transform_3(%arg0: i32, %arg1: i32) -> (i32, i32) {
    %c0_i32 = arith.constant 0 : i32
    %c0_i32_0 = arith.constant 0 : i32
    %c0_i32_1 = arith.constant 0 : i32
    return %c0_i32, %c0_i32_0 : i32, i32
  }
}

</mosaic_0001>

<llo_original>
// kernel: tpu_custom_call.1
$region0: #{tpu_custom_call.1}
  #allocation0 [shape = 'u32[]', space=smem, size = 0x4, offset = 0x4, fixed_abs, tag = 'smem constant byte address 0x4 - core index']
  #allocation1 [shape = 'u32[72,128]{1,0:T(1,128)}', space=vmem, size = 0x9000, scoped, tag = 'internal scratch']
  #allocation2 [shape = 'f32[2,128]{1,0:T(2,128)}', space=vmem, size = 0x400, scoped, tag = 'scratch operand']
  #allocation3 [shape = 'f32[2,128]{1,0:T(2,128)}', space=vmem, size = 0x400, scoped, tag = 'scratch operand']
  %s0 = inlined_call_operand.hbm [shape: f32[2,4,2,128], index: 0, kind: input, shape index: {}]
  %s1 = inlined_call_operand.hbm [shape: f32[2,4,2,128], index: 1, kind: input, shape index: {}]
  %s2 = inlined_call_operand.hbm [shape: f32[1,1], index: 2, kind: output, shape index: {0}]
  %s3 = inlined_call_operand.hbm [shape: f32[1,1], index: 3, kind: output, shape index: {1}]
  %4 = xla_tuple %s2, %s3
  %s5 = sld [smem:[#allocation0]]
  $region65: #{tpu_custom_call.1} parent=0
    _
  %s7 = ssub.s32 1, %s5
  %s8 = scalar_select 0, %s7, %s5
  $region1: #{tpu_custom_call.1} parent=0
    #allocation4 [shape = 'u8[8192]{0}', space=vmem, size = 0x2000, scoped, tag = 'input window, operand 0']
    #allocation5 [shape = 's32[2]{0}', space=sflag, size = 0x8, scoped, tag = 'scoped memory for tpu_custom_call.1']
    #allocation6 [shape = 's32[2]{0}', space=sflag, size = 0x8, scoped, tag = 'scoped memory for tpu_custom_call.1']
    #allocation7 [shape = 'u8[8192]{0}', space=vmem, size = 0x2000, scoped, tag = 'input window, operand 1']
    #allocation8 [shape = 's32[2]{0}', space=sflag, size = 0x8, scoped, tag = 'scoped memory for tpu_custom_call.1']
    #allocation9 [shape = 'u8[512]{0}', space=vmem, size = 0x400, scoped, tag = 'output window, operand 0, single buffered']
    #allocation10 [shape = 'u8[512]{0}', space=vmem, size = 0x400, scoped, tag = 'output window, operand 1, single buffered']
    #allocation11 [shape = 's32[1]{0}', space=sflag, size = 0x4, scoped, tag = 'scoped memory for tpu_custom_call.1']
    %9 = vsyncpa [#allocation5], 0
    %s10 = scalar_lea.sflag [#allocation5], 1
    %11 = vsyncpa %s10, 0
    %12 = vsyncpa [#allocation8], 0
    %s13 = scalar_lea.sflag [#allocation8], 1
    %14 = vsyncpa %s13, 0
    %15 = vsyncpa [#allocation6], 0
    %16 = vsyncpa [#allocation11], 0
    loop: start=0, step=1, limit=4
    $region2: #{tpu_custom_call.1} parent=1 // loop_pre_header
      _
    $region3: #{tpu_custom_call.1} parent=1 // loop_header
      %s18 = sphi 0, %s22
      %p19 = scmp.ge.s32.totalorder %s18, 4
      %s25 = sphi 0, %s37
      %s26 = sphi 0, %s33
      %s27 = sphi 0, %s25
      %s28 = sphi 0, %s26
      %s29 = sphi 0, %s27
      %s30 = sphi 0, %s28
      %s42 = sphi 0, %s44
      %s45 = sphi 0, %s42
      %s46 = sphi 0, %s45
      %s62 = sphi 0, %s46
      %s70 = sphi 0, %s72
      %s73 = sphi 0, %s70
      %s74 = sphi 0, %s73
      %s90 = sphi 0, %s74
      %s94 = sphi 0, %s94
      %s96 = sphi 0, %s94
      %s97 = sphi 0, %s96
      %s111 = sphi 0, %s97
      %s115 = sphi 0, %s115
      %s117 = sphi 0, %s115
      %s118 = sphi 0, %s117
      %s132 = sphi 0, %s118
    $region4: #{tpu_custom_call.1} parent=1 // loop_header_branch
      %21 = sbr.rel (%p19) target = $region8
    $region5: #{tpu_custom_call.1} parent=1 // loop_body
      %s23 = ssub.s32 %s18, 1
      %s24 = ssub.s32 %s18, 2
      %s31 = sadd.s32 1, %s26
      %p32 = scmp.ge.s32.totalorder %s31, 1
      %s33 = scalar_select %p32, 0, %s31
      %s34 = sadd.s32 1, %s25
      %s35 = scalar_select %p32, %s34, %s25
      %p36 = scmp.ge.s32.totalorder %s35, 2
      %s37 = scalar_select %p36, 0, %s35
      %s38 = ssub.s32 %s25, %s37
      %s39 = ssub.s32 %s26, %s33
      %s40 = sor.u32 %s38, %s39
      %p41 = scmp.eq.s32.totalorder %s40, 0
      %s43 = sadd.s32 %s42, 1
      %s44 = scalar_select %p41, %s42, %s43
      %p47 = pneg %p41
      %p48 = scmp.eq.s32.totalorder %s18, 1
      %p49 = por %p47, %p48
      %p50 = scmp.ne.s32.totalorder %s42, %s45
      %p51 = scmp.eq.s32.totalorder %s18, 0
      %p52 = por %p50, %p51
      %p53 = scmp.ne.s32.totalorder %s42, %s45
      %p54 = scmp.eq.s32.totalorder %s23, 1
      %p55 = por %p53, %p54
      %p56 = scmp.ne.s32.totalorder %s45, %s46
      %p57 = scmp.eq.s32.totalorder %s23, 0
      %p58 = por %p56, %p57
      %p59 = scmp.ne.s32.totalorder %s45, %s46
      %p60 = scmp.eq.s32.totalorder %s24, 1
      %p61 = por %p59, %p60
      %p63 = scmp.ne.s32.totalorder %s46, %s62
      %p64 = scmp.eq.s32.totalorder %s24, 0
      %p65 = por %p63, %p64
      %s66 = ssub.s32 %s25, %s37
      %s67 = ssub.s32 %s26, %s33
      %s68 = sor.u32 %s66, %s67
      %p69 = scmp.eq.s32.totalorder %s68, 0
      %s71 = sadd.s32 %s70, 1
      %s72 = scalar_select %p69, %s70, %s71
      %p75 = pneg %p69
      %p76 = scmp.eq.s32.totalorder %s18, 1
      %p77 = por %p75, %p76
      %p78 = scmp.ne.s32.totalorder %s70, %s73
      %p79 = scmp.eq.s32.totalorder %s18, 0
      %p80 = por %p78, %p79
      %p81 = scmp.ne.s32.totalorder %s70, %s73
      %p82 = scmp.eq.s32.totalorder %s23, 1
      %p83 = por %p81, %p82
      %p84 = scmp.ne.s32.totalorder %s73, %s74
      %p85 = scmp.eq.s32.totalorder %s23, 0
      %p86 = por %p84, %p85
      %p87 = scmp.ne.s32.totalorder %s73, %s74
      %p88 = scmp.eq.s32.totalorder %s24, 1
      %p89 = por %p87, %p88
      %p91 = scmp.ne.s32.totalorder %s74, %s90
      %p92 = scmp.eq.s32.totalorder %s24, 0
      %p93 = por %p91, %p92
      %s95 = sadd.s32 %s94, 1
      %p98 = scmp.eq.s32.totalorder %s18, 1
      %p99 = scmp.ne.s32.totalorder %s94, %s96
      %p100 = scmp.eq.s32.totalorder %s18, 0
      %p101 = por %p99, %p100
      %p102 = scmp.ne.s32.totalorder %s94, %s96
      %p103 = scmp.eq.s32.totalorder %s23, 1
      %p104 = por %p102, %p103
      %p105 = scmp.ne.s32.totalorder %s96, %s97
      %p106 = scmp.eq.s32.totalorder %s23, 0
      %p107 = por %p105, %p106
      %p108 = scmp.ne.s32.totalorder %s96, %s97
      %p109 = scmp.eq.s32.totalorder %s24, 1
      %p110 = por %p108, %p109
      %p112 = scmp.ne.s32.totalorder %s97, %s111
      %p113 = scmp.eq.s32.totalorder %s24, 0
      %p114 = por %p112, %p113
      %s116 = sadd.s32 %s115, 1
      %p119 = scmp.eq.s32.totalorder %s18, 1
      %p120 = scmp.ne.s32.totalorder %s115, %s117
      %p121 = scmp.eq.s32.totalorder %s18, 0
      %p122 = por %p120, %p121
      %p123 = scmp.ne.s32.totalorder %s115, %s117
      %p124 = scmp.eq.s32.totalorder %s23, 1
      %p125 = por %p123, %p124
      %p126 = scmp.ne.s32.totalorder %s117, %s118
      %p127 = scmp.eq.s32.totalorder %s23, 0
      %p128 = por %p126, %p127
      %p129 = scmp.ne.s32.totalorder %s117, %s118
      %p130 = scmp.eq.s32.totalorder %s24, 1
      %p131 = por %p129, %p130
      %p133 = scmp.ne.s32.totalorder %s118, %s132
      %p134 = scmp.eq.s32.totalorder %s24, 0
      %p135 = por %p133, %p134
      %p136 = scmp.le.s32.totalorder 1, %s18
      %p137 = scmp.lt.s32.totalorder %s18, 3
      %p138 = pnand %p136, %p137
      %p139 = pneg %p138
      // Predicated region
      $region9: #{tpu_custom_call.1} parent=5 // pred_check
        _
      $region10: #{tpu_custom_call.1} parent=5 // pred_check_branch
        %141 = sbr.rel (%p138) target = $region12
      $region11: #{tpu_custom_call.1} parent=5 // pred_region
        %s142 = ssub.s32 %s18, 1
      $region12: #{tpu_custom_call.1} parent=5 // pred_fallthru
        _
      %p143 = scmp.lt.s32.totalorder %s18, 2
      // Predicated region
      $region13: #{tpu_custom_call.1} parent=5 // pred_check
        %p144 = pneg %p143
      $region14: #{tpu_custom_call.1} parent=5 // pred_check_branch
        %146 = sbr.rel (%p144) target = $region16
      $region15: #{tpu_custom_call.1} parent=5 // pred_region
        // Predicated region
        $region17: #{tpu_custom_call.1} parent=15 // pred_check
          %p147 = pneg %p52
        $region18: #{tpu_custom_call.1} parent=15 // pred_check_branch
          %149 = sbr.rel (%p147) target = $region20
        $region19: #{tpu_custom_call.1} parent=15 // pred_region
          %s150 = sand.u32 %s42, 1
          %s151 = scalar_lea.sflag [#allocation5], %s150
          %s152 = sand.u32 %s42, 1
          %s153 = smul.addr %s152, 8
          %s154 = scalar_lea.vmem [#allocation4], %s153
          %156 = vsyncadd %s151, 0
          %s157 = smul.addr %s25, 4
          %s158 = sadd.s32 %s26, %s157
          %s159 = smul.addr %s158, 2
          %s160 = scalar_lea.hbm %s0, %s159
          %s161 = sshll.u32 %s160, 4
          %s162 = int_to_ptr.hbm [resolvable:$true] %s161
          %s163 = sshll.u32 %s154, 4
          %s164 = int_to_ptr.vmem [resolvable:$true] %s163
          %169 = dma.hbm_to_vmem [thread:$0]  %s162, 128, %s164, %s151, 32, 32, 2
        $region20: #{tpu_custom_call.1} parent=15 // pred_fallthru
          _
        // Predicated region
        $region21: #{tpu_custom_call.1} parent=15 // pred_check
          %p170 = pneg %p80
        $region22: #{tpu_custom_call.1} parent=15 // pred_check_branch
          %172 = sbr.rel (%p170) target = $region24
        $region23: #{tpu_custom_call.1} parent=15 // pred_region
          %s173 = sand.u32 %s70, 1
          %s174 = scalar_lea.sflag [#allocation8], %s173
          %s175 = sand.u32 %s70, 1
          %s176 = smul.addr %s175, 8
          %s177 = scalar_lea.vmem [#allocation7], %s176
          %179 = vsyncadd %s174, 0
          %s180 = smul.addr %s25, 4
          %s181 = sadd.s32 %s26, %s180
          %s182 = smul.addr %s181, 2
          %s183 = scalar_lea.hbm %s1, %s182
          %s184 = sshll.u32 %s183, 4
          %s185 = int_to_ptr.hbm [resolvable:$true] %s184
          %s186 = sshll.u32 %s177, 4
          %s187 = int_to_ptr.vmem [resolvable:$true] %s186
          %192 = dma.hbm_to_vmem [thread:$0]  %s185, 128, %s187, %s174, 32, 32, 2
        $region24: #{tpu_custom_call.1} parent=15 // pred_fallthru
          _
      $region16: #{tpu_custom_call.1} parent=5 // pred_fallthru
        _
      %p193 = scmp.le.s32.totalorder 1, %s18
      %p194 = scmp.lt.s32.totalorder %s18, 3
      %p195 = pnand %p193, %p194
      %p196 = pneg %p195
      // Predicated region
      $region25: #{tpu_custom_call.1} parent=5 // pred_check
        _
      $region26: #{tpu_custom_call.1} parent=5 // pred_check_branch
        %198 = sbr.rel (%p195) target = $region28
      $region27: #{tpu_custom_call.1} parent=5 // pred_region
        %s199 = ssub.s32 %s18, 1
        %s200 = sand.u32 %s45, 1
        %s201 = scalar_lea.sflag [#allocation5], %s200
        %s202 = sand.u32 %s45, 1
        %s203 = smul.addr %s202, 8
        %s204 = scalar_lea.vmem [#allocation4], %s203
        // Predicated region
        $region29: #{tpu_custom_call.1} parent=27 // pred_check
          %p205 = pneg %p58
        $region30: #{tpu_custom_call.1} parent=27 // pred_check_branch
          %207 = sbr.rel (%p205) target = $region32
        $region31: #{tpu_custom_call.1} parent=27 // pred_region
          %209 = dma.done %s201, 128
        $region32: #{tpu_custom_call.1} parent=27 // pred_fallthru
          _
        %s210 = sand.u32 %s73, 1
        %s211 = scalar_lea.sflag [#allocation8], %s210
        %s212 = sand.u32 %s73, 1
        %s213 = smul.addr %s212, 8
        %s214 = scalar_lea.vmem [#allocation7], %s213
        // Predicated region
        $region33: #{tpu_custom_call.1} parent=27 // pred_check
          %p215 = pneg %p86
        $region34: #{tpu_custom_call.1} parent=27 // pred_check_branch
          %217 = sbr.rel (%p215) target = $region36
        $region35: #{tpu_custom_call.1} parent=27 // pred_region
          %219 = dma.done %s211, 128
        $region36: #{tpu_custom_call.1} parent=27 // pred_fallthru
          _
        %s220 = sand.u32 %s45, 1
        %s221 = scalar_lea.sflag [#allocation5], %s220
        %s222 = sand.u32 %s45, 1
        %s223 = smul.addr %s222, 8
        %s224 = scalar_lea.vmem [#allocation4], %s223
        %p225 = pneg %p58
        %p226 = pneg %p55
        %s227 = sand.u32 %s73, 1
        %s228 = scalar_lea.sflag [#allocation8], %s227
        %s229 = sand.u32 %s73, 1
        %s230 = smul.addr %s229, 8
        %s231 = scalar_lea.vmem [#allocation7], %s230
        %p232 = pneg %p86
        %p233 = pneg %p83
        %p234 = pneg %p107
        %p235 = pneg %p104
        %p236 = pneg %p128
        %p237 = pneg %p125
        %p238 = scmp.eq.s32.totalorder %s27, 0
        %p239 = scmp.eq.s32.totalorder %s28, 0
        %p240 = pnand %p238, %p239
        %p241 = pneg %p240
        // Predicated region
        $region37: #{tpu_custom_call.1} parent=27 // pred_check
          _
        $region38: #{tpu_custom_call.1} parent=27 // pred_check_branch
          %243 = sbr.rel (%p240) target = $region40
        $region39: #{tpu_custom_call.1} parent=27 // pred_region
          %244 = vst [vmem:[#allocation2] sm:$0x3] 0.0
          %245 = vst [vmem:[#allocation3] sm:$0x3] 0.0
        $region40: #{tpu_custom_call.1} parent=27 // pred_fallthru
          _
        %v246 = vld [vmem:[%s214] sm:$0x3]
        %v247 = vld [vmem:[%s214 + $0x2] sm:$0x3]
        %v248 = vld [vmem:[%s214 + $0x4] sm:$0x3]
        %v249 = vld [vmem:[%s214 + $0x6] sm:$0x3]
        %v250 = vld [vmem:[%s204] sm:$0x3]
        %v251 = vld [vmem:[%s204 + $0x2] sm:$0x3]
        %v252 = vld [vmem:[%s204 + $0x4] sm:$0x3]
        %v253 = vld [vmem:[%s204 + $0x6] sm:$0x3]
        %v254 = vsub.f32 %v246, %v250
        %v255 = vsub.f32 %v247, %v251
        %v256 = vsub.f32 %v248, %v252
        %v257 = vsub.f32 %v249, %v253
        %v258 = vld [vmem:[#allocation2] sm:$0x3]
        %v259 = vand.u32 2147483647, %v254
        %v260 = vand.u32 2147483647, %v255
        %v261 = vand.u32 2147483647, %v256
        %v262 = vand.u32 2147483647, %v257
        %vm263 = vcmask 1041408
        %v264 = vsel %vm263, %v259, 0.0
        %v265 = vsel %vm263, %v260, 0.0
        %v266 = vadd.f32 %v264, %v265
        %v267 = vsel %vm263, %v261, 0.0
        %v268 = vadd.f32 %v266, %v267
        %v269 = vsel %vm263, %v262, 0.0
        %v270 = vadd.f32 %v268, %v269
        %v271 = vadd.f32 %v258, %v270
        %272 = vst [vmem:[#allocation2] sm:$0x3] %v271
        %v273 = vld [vmem:[#allocation3] sm:$0x3]
        %v274 = vmul.f32 %v254, %v254
        %v275 = vmul.f32 %v255, %v255
        %v276 = vmul.f32 %v256, %v256
        %v277 = vmul.f32 %v257, %v257
        %v278 = vsel %vm263, %v274, 0.0
        %v279 = vsel %vm263, %v275, 0.0
        %v280 = vadd.f32 %v278, %v279
        %v281 = vsel %vm263, %v276, 0.0
        %v282 = vadd.f32 %v280, %v281
        %v283 = vsel %vm263, %v277, 0.0
        %v284 = vadd.f32 %v282, %v283
        %v285 = vrsqrt.pop %v284
        %v286 = vmul.f32 %v285, %v284
        %v287 = vmul.f32 %v286, %v285
        %v288 = vmul.f32 0.5, %v287
        %v289 = vsub.f32 1.5, %v288
        %v290 = vmul.f32 %v285, %v289
        %v291 = vmul.f32 %v284, %v290
        %vm292 = vcmp.eq.f32.partialorder %v284, inf
        %v293 = vsel %vm292, %v284, %v291
        %vm294 = vcmp.eq.f32.partialorder %v284, 0.0
        %v295 = vand.u32 %v284, 2147483648
        %v296 = vsel %vm294, %v295, %v293
        %v297 = vadd.f32 %v273, %v296
        %298 = vst [vmem:[#allocation3] sm:$0x3] %v297
        %p299 = scmp.eq.s32.totalorder %s27, 1
        %p300 = pnand %p299, %p239
        %p301 = pneg %p300
        // Predicated region
        $region41: #{tpu_custom_call.1} parent=27 // pred_check
          _
        $region42: #{tpu_custom_call.1} parent=27 // pred_check_branch
          %303 = sbr.rel (%p300) target = $region44
        $region43: #{tpu_custom_call.1} parent=27 // pred_region
          %v304 = vld [vmem:[#allocation2] sm:$0x3]
          %v305 = vsel %vm263, %v304, 0.0
          %306 = vadd.xlane.f32.xlu0 %v305
          %v307 = vpop.xlane.xlu0 %306
          %v308 = vrot.slane %v307, 4
          %v309 = vadd.f32 %v307, %v308
          %v310 = vrot.slane %v309, 2
          %v311 = vadd.f32 %v309, %v310
          %v312 = vrot.slane %v311, 1
          %v313 = vadd.f32 %v311, %v312
          %s314 = vtos %v313
          %v315 = vstv %s314
          %v316 = vmul.f32 %v315, 0.00048828125
          %vm317 = vcmask 0
          %318 = vst.msk [vmem:[#allocation9] sm:$0x1] %vm317, %v316
          %v319 = vld [vmem:[#allocation3] sm:$0x3]
          %v320 = vsel %vm263, %v319, 0.0
          %321 = vadd.xlane.f32.xlu0 %v320
          %v322 = vpop.xlane.xlu0 %321
          %v323 = vrot.slane %v322, 4
          %v324 = vadd.f32 %v322, %v323
          %v325 = vrot.slane %v324, 2
          %v326 = vadd.f32 %v324, %v325
          %v327 = vrot.slane %v326, 1
          %v328 = vadd.f32 %v326, %v327
          %s329 = vtos %v328
          %v330 = vstv %s329
          %v331 = vmul.f32 %v330, 0.001953125
          %332 = vst.msk [vmem:[#allocation10] sm:$0x1] %vm317, %v331
        $region44: #{tpu_custom_call.1} parent=27 // pred_fallthru
          _
        // Predicated region
        $region45: #{tpu_custom_call.1} parent=27 // pred_check
          %p333 = pneg %p104
        $region46: #{tpu_custom_call.1} parent=27 // pred_check_branch
          %335 = sbr.rel (%p333) target = $region48
        $region47: #{tpu_custom_call.1} parent=27 // pred_region
          %337 = vsyncadd [#allocation6], 0
          %s339 = sshll.u32 [#allocation9], 4
          %s340 = int_to_ptr.vmem [resolvable:$true] %s339
          %s341 = sshll.u32 %s2, 4
          %s342 = int_to_ptr.hbm [resolvable:$true] %s341
          %344 = dma.vmem_to_hbm [thread:$0]  %s340, 16, %s342, [#allocation6]
        $region48: #{tpu_custom_call.1} parent=27 // pred_fallthru
          _
        // Predicated region
        $region49: #{tpu_custom_call.1} parent=27 // pred_check
          %p345 = pneg %p125
        $region50: #{tpu_custom_call.1} parent=27 // pred_check_branch
          %347 = sbr.rel (%p345) target = $region52
        $region51: #{tpu_custom_call.1} parent=27 // pred_region
          %349 = vsyncadd [#allocation11], 0
          %s351 = sshll.u32 [#allocation10], 4
          %s352 = int_to_ptr.vmem [resolvable:$true] %s351
          %s353 = sshll.u32 %s3, 4
          %s354 = int_to_ptr.hbm [resolvable:$true] %s353
          %356 = dma.vmem_to_hbm [thread:$0]  %s352, 16, %s354, [#allocation11]
        $region52: #{tpu_custom_call.1} parent=27 // pred_fallthru
          _
        // Predicated region
        $region53: #{tpu_custom_call.1} parent=27 // pred_check
          %p357 = pneg %p104
        $region54: #{tpu_custom_call.1} parent=27 // pred_check_branch
          %359 = sbr.rel (%p357) target = $region56
        $region55: #{tpu_custom_call.1} parent=27 // pred_region
          %361 = dma.done [#allocation6], 16
        $region56: #{tpu_custom_call.1} parent=27 // pred_fallthru
          _
        // Predicated region
        $region57: #{tpu_custom_call.1} parent=27 // pred_check
          %p362 = pneg %p125
        $region58: #{tpu_custom_call.1} parent=27 // pred_check_branch
          %364 = sbr.rel (%p362) target = $region60
        $region59: #{tpu_custom_call.1} parent=27 // pred_region
          %366 = dma.done [#allocation11], 16
        $region60: #{tpu_custom_call.1} parent=27 // pred_fallthru
          _
      $region28: #{tpu_custom_call.1} parent=5 // pred_fallthru
        _
      %p367 = scmp.le.s32.totalorder 2, %s18
      // Predicated region
      $region61: #{tpu_custom_call.1} parent=5 // pred_check
        %p368 = pneg %p367
      $region62: #{tpu_custom_call.1} parent=5 // pred_check_branch
        %370 = sbr.rel (%p368) target = $region64
      $region63: #{tpu_custom_call.1} parent=5 // pred_region
        %s371 = ssub.s32 %s18, 2
      $region64: #{tpu_custom_call.1} parent=5 // pred_fallthru
        _
    $region6: #{tpu_custom_call.1} parent=1 // loop_footer
      %s22 = sadd.s32 1, %s18
    $region7: #{tpu_custom_call.1} parent=1 // loop_footer_branch
      %17 = sbr.rel target = $region3
    $region8: #{tpu_custom_call.1} parent=1 // loop_exit
      _
    %372 = vsyncpa [#allocation5], 1
    %s373 = scalar_lea.sflag [#allocation5], 1
    %374 = vsyncpa %s373, 1
    %375 = vsyncpa [#allocation8], 1
    %s376 = scalar_lea.sflag [#allocation8], 1
    %377 = vsyncpa %s376, 1
    %378 = vsyncpa [#allocation6], 1
    %s379 = scalar_lea.sflag [#allocation6], 1
    %380 = vsyncpa %s379, 1
    %381 = vsyncpa [#allocation11], 1

</llo_original>
